<compile_context>
chip_gen: v6e
topology: v6e:2x2x1
jax: 0.10.0
libtpu: 0.0.40
codegen_flags: <defaults>
</compile_context>

<pallas_src>
import jax
import jax.numpy as jnp
from jax.experimental import pallas as pl
from jax.experimental.pallas import tpu as pltpu

# Channel sizes fixed by the PyTorch module.
CIN, CMID, COUT = 5, 2, 8

# Max pixel-rows (of 128 lanes each) per grid step: 1024 * 128 = 131072 pixels.
# Per-step VMEM: (CIN + COUT) * 131072 * 4 B ~= 6.5 MiB; x2 pipeline buffers
# ~= 13 MiB -> comfortably inside every generation's VMEM (incl. v7x 64 MiB/TC).
MAX_TILE_S = 1024


def _fused_kernel(wc_ref, wl_ref, b_ref, x_ref, o_ref):
    """Per pixel: out[o] = b[o] + sum_m wl[o, m] * silu(sum_c wc[m, c] * x[c]).

    wc_ref: SMEM (CMID*CIN,)  1x1-conv weight, row-major [m, c]
    wl_ref: SMEM (COUT*CMID,) linear weight,  row-major [o, m]
    b_ref:  SMEM (COUT,)      linear bias
    x_ref:  VMEM (CIN, TS, 128)  dense pixel slab per input channel
    o_ref:  VMEM (COUT, TS, 128) dense pixel slab per output channel
    """
    xs = [x_ref[c] for c in range(CIN)]          # each (TS, 128), fully dense

    # 1x1 conv (5 -> 2) + SiLU, unrolled VPU FMAs (sigmoid runs on the EUP).
    v3 = []
    for m in range(CMID):
        acc = wc_ref[m * CIN] * xs[0]
        for c in range(1, CIN):
            acc = acc + wc_ref[m * CIN + c] * xs[c]
        v3.append(acc * jax.nn.sigmoid(acc))

    # Linear (2 -> 8) over the channel axis, unrolled.
    for o in range(COUT):
        acc = b_ref[o] + wl_ref[o * CMID] * v3[0]
        for m in range(1, CMID):
            acc = acc + wl_ref[o * CMID + m] * v3[m]
        o_ref[o] = acc.astype(o_ref.dtype)


def fused_forward(x_nchw, conv_w, lin_w, lin_b, *, tile_s=None):
    """x_nchw: (N, 5, H, W) in PyTorch NCHW layout.
    conv_w: (2, 5) (= conv.weight[:, :, 0, 0]); lin_w: (8, 2); lin_b: (8,).
    Returns (N, 8, H, W)."""
    N, C, H, W = x_nchw.shape
    assert C == CIN, f"expected {CIN} input channels, got {C}"
    M = H * W
    dtype = x_nchw.dtype

    # Pixels -> dense (sublane, lane) slabs: M -> (s_pad, 128).
    s_total = pl.cdiv(M, 128)
    if tile_s is None:
        # Biggest slab under the VMEM cap, but keep >= 2 grid steps when the
        # problem allows (feeds both TensorCores on v7x).
        tile_s = min(MAX_TILE_S, max(8, pl.cdiv(pl.cdiv(s_total, 2), 8) * 8))
    s_pad = pl.cdiv(s_total, tile_s) * tile_s
    m_pad = s_pad * 128
    grid_s = s_pad // tile_s

    x_cm = x_nchw.reshape(N, CIN, M)
    if m_pad != M:
        x_cm = jnp.pad(x_cm, ((0, 0), (0, 0), (0, m_pad - M)))
    x_cm = x_cm.reshape(N, CIN, s_pad, 128)

    # Flatten the 34 weight/bias scalars for SMEM residency.
    wc = conv_w.reshape(-1).astype(jnp.float32)   # (CMID*CIN,)  [m, c]
    wl = lin_w.reshape(-1).astype(jnp.float32)    # (COUT*CMID,) [o, m]
    b = lin_b.reshape(-1).astype(jnp.float32)     # (COUT,)

    out = pl.pallas_call(
        _fused_kernel,
        out_shape=jax.ShapeDtypeStruct((N, COUT, s_pad, 128), dtype),
        grid=(N, grid_s),
        in_specs=[
            pl.BlockSpec(memory_space=pltpu.MemorySpace.SMEM),   # conv weights
            pl.BlockSpec(memory_space=pltpu.MemorySpace.SMEM),   # linear weights
            pl.BlockSpec(memory_space=pltpu.MemorySpace.SMEM),   # linear bias
            pl.BlockSpec((None, CIN, tile_s, 128), lambda n, i: (n, 0, i, 0)),
        ],
        out_specs=pl.BlockSpec((None, COUT, tile_s, 128), lambda n, i: (n, 0, i, 0)),
        compiler_params=pltpu.CompilerParams(
            dimension_semantics=("parallel", "parallel"),
            vmem_limit_bytes=32 * 1024 * 1024,
        ),
    )(wc, wl, b, x_cm)

    return out.reshape(N, COUT, m_pad)[:, :, :M].reshape(N, COUT, H, W)


if __name__ == "__main__":
    key = jax.random.PRNGKey(0)
    kx, kc, kw, kb = jax.random.split(key, 4)

    # Shapes from the PyTorch spec: x1 = torch.randn(1, 5, 64, 64).
    N, H, W = 1, 64, 64
    x = jax.random.normal(kx, (N, CIN, H, W), dtype=jnp.float32)
    conv_w = jax.random.normal(kc, (CMID, CIN), dtype=jnp.float32) * 0.3   # 1x1 conv, no bias
    lin_w = jax.random.normal(kw, (COUT, CMID), dtype=jnp.float32) * 0.3
    lin_b = jax.random.normal(kb, (COUT,), dtype=jnp.float32) * 0.1

    out = jax.block_until_ready(fused_forward(x, conv_w, lin_w, lin_b))

    # Pure-JAX reference with the same semantics (conv + SiLU + linear over channels).
    v1 = jnp.einsum("nchw,mc->nmhw", x, conv_w)
    v3 = v1 * jax.nn.sigmoid(v1)
    ref = jnp.einsum("nmhw,om->nohw", v3, lin_w) + lin_b[None, :, None, None]

    assert out.shape == (N, COUT, H, W)
    assert jnp.allclose(out, ref, atol=1e-5, rtol=1e-5)

    print("KERNEL_OK")
</pallas_src>

<mosaic_0001>
module attributes {stable_mosaic.version = 11 : i64} {
  func.func @_fused_kernel(%arg0: i32, %arg1: i32, %arg2: memref<10xf32, #tpu.memory_space<smem>>, %arg3: memref<16xf32, #tpu.memory_space<smem>>, %arg4: memref<8xf32, #tpu.memory_space<smem>>, %arg5: memref<1x5x16x128xf32, #tpu.memory_space<vmem>>, %arg6: memref<1x8x16x128xf32, #tpu.memory_space<vmem>>) attributes {dimension_semantics = [#tpu.dimension_semantics<parallel>, #tpu.dimension_semantics<parallel>], iteration_bounds = array<i64: 1, 2>, scalar_prefetch = 0 : i64, scratch_operands = 0 : i64, tpu.core_type = #tpu.core_type<tc>, window_params = [{transform_indices = @transform_0, window_bounds = array<i64: 10>}, {transform_indices = @transform_1, window_bounds = array<i64: 16>}, {transform_indices = @transform_2, window_bounds = array<i64: 8>}, {transform_indices = @transform_3, window_bounds = array<i64: 1, 5, 16, 128>}, {transform_indices = @transform_4, window_bounds = array<i64: 1, 8, 16, 128>}]} {
    %c0 = arith.constant 0 : index
    %c0_0 = arith.constant 0 : index
    %c0_1 = arith.constant 0 : index
    %c0_2 = arith.constant 0 : index
    %0 = vector.load %arg5[%c0, %c0_0, %c0_1, %c0_2] : memref<1x5x16x128xf32, #tpu.memory_space<vmem>>, vector<1x1x16x128xf32>
    %1 = vector.shape_cast %0 : vector<1x1x16x128xf32> to vector<16x128xf32>
    %c0_3 = arith.constant 0 : index
    %c1 = arith.constant 1 : index
    %c0_4 = arith.constant 0 : index
    %c0_5 = arith.constant 0 : index
    %2 = vector.load %arg5[%c0_3, %c1, %c0_4, %c0_5] : memref<1x5x16x128xf32, #tpu.memory_space<vmem>>, vector<1x1x16x128xf32>
    %3 = vector.shape_cast %2 : vector<1x1x16x128xf32> to vector<16x128xf32>
    %c0_6 = arith.constant 0 : index
    %c2 = arith.constant 2 : index
    %c0_7 = arith.constant 0 : index
    %c0_8 = arith.constant 0 : index
    %4 = vector.load %arg5[%c0_6, %c2, %c0_7, %c0_8] : memref<1x5x16x128xf32, #tpu.memory_space<vmem>>, vector<1x1x16x128xf32>
    %5 = vector.shape_cast %4 : vector<1x1x16x128xf32> to vector<16x128xf32>
    %c0_9 = arith.constant 0 : index
    %c3 = arith.constant 3 : index
    %c0_10 = arith.constant 0 : index
    %c0_11 = arith.constant 0 : index
    %6 = vector.load %arg5[%c0_9, %c3, %c0_10, %c0_11] : memref<1x5x16x128xf32, #tpu.memory_space<vmem>>, vector<1x1x16x128xf32>
    %7 = vector.shape_cast %6 : vector<1x1x16x128xf32> to vector<16x128xf32>
    %c0_12 = arith.constant 0 : index
    %c4 = arith.constant 4 : index
    %c0_13 = arith.constant 0 : index
    %c0_14 = arith.constant 0 : index
    %8 = vector.load %arg5[%c0_12, %c4, %c0_13, %c0_14] : memref<1x5x16x128xf32, #tpu.memory_space<vmem>>, vector<1x1x16x128xf32>
    %9 = vector.shape_cast %8 : vector<1x1x16x128xf32> to vector<16x128xf32>
    %c0_15 = arith.constant 0 : index
    %10 = memref.load %arg2[%c0_15] : memref<10xf32, #tpu.memory_space<smem>>
    %11 = vector.broadcast %10 : f32 to vector<16x128xf32>
    %12 = arith.mulf %11, %1 : vector<16x128xf32>
    %c1_16 = arith.constant 1 : index
    %13 = memref.load %arg2[%c1_16] : memref<10xf32, #tpu.memory_space<smem>>
    %14 = vector.broadcast %13 : f32 to vector<16x128xf32>
    %15 = arith.mulf %14, %3 : vector<16x128xf32>
    %16 = arith.addf %12, %15 : vector<16x128xf32>
    %c2_17 = arith.constant 2 : index
    %17 = memref.load %arg2[%c2_17] : memref<10xf32, #tpu.memory_space<smem>>
    %18 = vector.broadcast %17 : f32 to vector<16x128xf32>
    %19 = arith.mulf %18, %5 : vector<16x128xf32>
    %20 = arith.addf %16, %19 : vector<16x128xf32>
    %c3_18 = arith.constant 3 : index
    %21 = memref.load %arg2[%c3_18] : memref<10xf32, #tpu.memory_space<smem>>
    %22 = vector.broadcast %21 : f32 to vector<16x128xf32>
    %23 = arith.mulf %22, %7 : vector<16x128xf32>
    %24 = arith.addf %20, %23 : vector<16x128xf32>
    %c4_19 = arith.constant 4 : index
    %25 = memref.load %arg2[%c4_19] : memref<10xf32, #tpu.memory_space<smem>>
    %26 = vector.broadcast %25 : f32 to vector<16x128xf32>
    %27 = arith.mulf %26, %9 : vector<16x128xf32>
    %28 = arith.addf %24, %27 : vector<16x128xf32>
    %29 = arith.negf %28 : vector<16x128xf32>
    %30 = math.exp %29 : vector<16x128xf32>
    %cst = arith.constant 1.000000e+00 : f32
    %31 = vector.broadcast %cst : f32 to vector<16x128xf32>
    %32 = arith.addf %31, %30 : vector<16x128xf32>
    %33 = arith.divf %31, %32 : vector<16x128xf32>
    %34 = arith.mulf %28, %33 : vector<16x128xf32>
    %c5 = arith.constant 5 : index
    %35 = memref.load %arg2[%c5] : memref<10xf32, #tpu.memory_space<smem>>
    %36 = vector.broadcast %35 : f32 to vector<16x128xf32>
    %37 = arith.mulf %36, %1 : vector<16x128xf32>
    %c6 = arith.constant 6 : index
    %38 = memref.load %arg2[%c6] : memref<10xf32, #tpu.memory_space<smem>>
    %39 = vector.broadcast %38 : f32 to vector<16x128xf32>
    %40 = arith.mulf %39, %3 : vector<16x128xf32>
    %41 = arith.addf %37, %40 : vector<16x128xf32>
    %c7 = arith.constant 7 : index
    %42 = memref.load %arg2[%c7] : memref<10xf32, #tpu.memory_space<smem>>
    %43 = vector.broadcast %42 : f32 to vector<16x128xf32>
    %44 = arith.mulf %43, %5 : vector<16x128xf32>
    %45 = arith.addf %41, %44 : vector<16x128xf32>
    %c8 = arith.constant 8 : index
    %46 = memref.load %arg2[%c8] : memref<10xf32, #tpu.memory_space<smem>>
    %47 = vector.broadcast %46 : f32 to vector<16x128xf32>
    %48 = arith.mulf %47, %7 : vector<16x128xf32>
    %49 = arith.addf %45, %48 : vector<16x128xf32>
    %c9 = arith.constant 9 : index
    %50 = memref.load %arg2[%c9] : memref<10xf32, #tpu.memory_space<smem>>
    %51 = vector.broadcast %50 : f32 to vector<16x128xf32>
    %52 = arith.mulf %51, %9 : vector<16x128xf32>
    %53 = arith.addf %49, %52 : vector<16x128xf32>
    %54 = arith.negf %53 : vector<16x128xf32>
    %55 = math.exp %54 : vector<16x128xf32>
    %cst_20 = arith.constant 1.000000e+00 : f32
    %56 = vector.broadcast %cst_20 : f32 to vector<16x128xf32>
    %57 = arith.addf %56, %55 : vector<16x128xf32>
    %58 = arith.divf %56, %57 : vector<16x128xf32>
    %59 = arith.mulf %53, %58 : vector<16x128xf32>
    %c0_21 = arith.constant 0 : index
    %60 = memref.load %arg4[%c0_21] : memref<8xf32, #tpu.memory_space<smem>>
    %c0_22 = arith.constant 0 : index
    %61 = memref.load %arg3[%c0_22] : memref<16xf32, #tpu.memory_space<smem>>
    %62 = vector.broadcast %61 : f32 to vector<16x128xf32>
    %63 = arith.mulf %62, %34 : vector<16x128xf32>
    %64 = vector.broadcast %60 : f32 to vector<16x128xf32>
    %65 = arith.addf %64, %63 : vector<16x128xf32>
    %c1_23 = arith.constant 1 : index
    %66 = memref.load %arg3[%c1_23] : memref<16xf32, #tpu.memory_space<smem>>
    %67 = vector.broadcast %66 : f32 to vector<16x128xf32>
    %68 = arith.mulf %67, %59 : vector<16x128xf32>
    %69 = arith.addf %65, %68 : vector<16x128xf32>
    %c0_24 = arith.constant 0 : index
    %c0_25 = arith.constant 0 : index
    %c0_26 = arith.constant 0 : index
    %c0_27 = arith.constant 0 : index
    %70 = vector.load %arg6[%c0_24, %c0_25, %c0_26, %c0_27] : memref<1x8x16x128xf32, #tpu.memory_space<vmem>>, vector<1x1x16x128xf32>
    %71 = vector.shape_cast %70 : vector<1x1x16x128xf32> to vector<16x128xf32>
    %72 = vector.shape_cast %69 : vector<16x128xf32> to vector<1x1x16x128xf32>
    tpu.vector_store %arg6[%c0_24, %c0_25, %c0_26, %c0_27], %72 {strides = array<i32>} : memref<1x8x16x128xf32, #tpu.memory_space<vmem>>, vector<1x1x16x128xf32>,
    %c1_28 = arith.constant 1 : index
    %73 = memref.load %arg4[%c1_28] : memref<8xf32, #tpu.memory_space<smem>>
    %c2_29 = arith.constant 2 : index
    %74 = memref.load %arg3[%c2_29] : memref<16xf32, #tpu.memory_space<smem>>
    %75 = vector.broadcast %74 : f32 to vector<16x128xf32>
    %76 = arith.mulf %75, %34 : vector<16x128xf32>
    %77 = vector.broadcast %73 : f32 to vector<16x128xf32>
    %78 = arith.addf %77, %76 : vector<16x128xf32>
    %c3_30 = arith.constant 3 : index
    %79 = memref.load %arg3[%c3_30] : memref<16xf32, #tpu.memory_space<smem>>
    %80 = vector.broadcast %79 : f32 to vector<16x128xf32>
    %81 = arith.mulf %80, %59 : vector<16x128xf32>
    %82 = arith.addf %78, %81 : vector<16x128xf32>
    %c0_31 = arith.constant 0 : index
    %c1_32 = arith.constant 1 : index
    %c0_33 = arith.constant 0 : index
    %c0_34 = arith.constant 0 : index
    %83 = vector.load %arg6[%c0_31, %c1_32, %c0_33, %c0_34] : memref<1x8x16x128xf32, #tpu.memory_space<vmem>>, vector<1x1x16x128xf32>
    %84 = vector.shape_cast %83 : vector<1x1x16x128xf32> to vector<16x128xf32>
    %85 = vector.shape_cast %82 : vector<16x128xf32> to vector<1x1x16x128xf32>
    tpu.vector_store %arg6[%c0_31, %c1_32, %c0_33, %c0_34], %85 {strides = array<i32>} : memref<1x8x16x128xf32, #tpu.memory_space<vmem>>, vector<1x1x16x128xf32>,
    %c2_35 = arith.constant 2 : index
    %86 = memref.load %arg4[%c2_35] : memref<8xf32, #tpu.memory_space<smem>>
    %c4_36 = arith.constant 4 : index
    %87 = memref.load %arg3[%c4_36] : memref<16xf32, #tpu.memory_space<smem>>
    %88 = vector.broadcast %87 : f32 to vector<16x128xf32>
    %89 = arith.mulf %88, %34 : vector<16x128xf32>
    %90 = vector.broadcast %86 : f32 to vector<16x128xf32>
    %91 = arith.addf %90, %89 : vector<16x128xf32>
    %c5_37 = arith.constant 5 : index
    %92 = memref.load %arg3[%c5_37] : memref<16xf32, #tpu.memory_space<smem>>
    %93 = vector.broadcast %92 : f32 to vector<16x128xf32>
    %94 = arith.mulf %93, %59 : vector<16x128xf32>
    %95 = arith.addf %91, %94 : vector<16x128xf32>
    %c0_38 = arith.constant 0 : index
    %c2_39 = arith.constant 2 : index
    %c0_40 = arith.constant 0 : index
    %c0_41 = arith.constant 0 : index
    %96 = vector.load %arg6[%c0_38, %c2_39, %c0_40, %c0_41] : memref<1x8x16x128xf32, #tpu.memory_space<vmem>>, vector<1x1x16x128xf32>
    %97 = vector.shape_cast %96 : vector<1x1x16x128xf32> to vector<16x128xf32>
    %98 = vector.shape_cast %95 : vector<16x128xf32> to vector<1x1x16x128xf32>
    tpu.vector_store %arg6[%c0_38, %c2_39, %c0_40, %c0_41], %98 {strides = array<i32>} : memref<1x8x16x128xf32, #tpu.memory_space<vmem>>, vector<1x1x16x128xf32>,
    %c3_42 = arith.constant 3 : index
    %99 = memref.load %arg4[%c3_42] : memref<8xf32, #tpu.memory_space<smem>>
    %c6_43 = arith.constant 6 : index
    %100 = memref.load %arg3[%c6_43] : memref<16xf32, #tpu.memory_space<smem>>
    %101 = vector.broadcast %100 : f32 to vector<16x128xf32>
    %102 = arith.mulf %101, %34 : vector<16x128xf32>
    %103 = vector.broadcast %99 : f32 to vector<16x128xf32>
    %104 = arith.addf %103, %102 : vector<16x128xf32>
    %c7_44 = arith.constant 7 : index
    %105 = memref.load %arg3[%c7_44] : memref<16xf32, #tpu.memory_space<smem>>
    %106 = vector.broadcast %105 : f32 to vector<16x128xf32>
    %107 = arith.mulf %106, %59 : vector<16x128xf32>
    %108 = arith.addf %104, %107 : vector<16x128xf32>
    %c0_45 = arith.constant 0 : index
    %c3_46 = arith.constant 3 : index
    %c0_47 = arith.constant 0 : index
    %c0_48 = arith.constant 0 : index
    %109 = vector.load %arg6[%c0_45, %c3_46, %c0_47, %c0_48] : memref<1x8x16x128xf32, #tpu.memory_space<vmem>>, vector<1x1x16x128xf32>
    %110 = vector.shape_cast %109 : vector<1x1x16x128xf32> to vector<16x128xf32>
    %111 = vector.shape_cast %108 : vector<16x128xf32> to vector<1x1x16x128xf32>
    tpu.vector_store %arg6[%c0_45, %c3_46, %c0_47, %c0_48], %111 {strides = array<i32>} : memref<1x8x16x128xf32, #tpu.memory_space<vmem>>, vector<1x1x16x128xf32>,
    %c4_49 = arith.constant 4 : index
    %112 = memref.load %arg4[%c4_49] : memref<8xf32, #tpu.memory_space<smem>>
    %c8_50 = arith.constant 8 : index
    %113 = memref.load %arg3[%c8_50] : memref<16xf32, #tpu.memory_space<smem>>
    %114 = vector.broadcast %113 : f32 to vector<16x128xf32>
    %115 = arith.mulf %114, %34 : vector<16x128xf32>
    %116 = vector.broadcast %112 : f32 to vector<16x128xf32>
    %117 = arith.addf %116, %115 : vector<16x128xf32>
    %c9_51 = arith.constant 9 : index
    %118 = memref.load %arg3[%c9_51] : memref<16xf32, #tpu.memory_space<smem>>
    %119 = vector.broadcast %118 : f32 to vector<16x128xf32>
    %120 = arith.mulf %119, %59 : vector<16x128xf32>
    %121 = arith.addf %117, %120 : vector<16x128xf32>
    %c0_52 = arith.constant 0 : index
    %c4_53 = arith.constant 4 : index
    %c0_54 = arith.constant 0 : index
    %c0_55 = arith.constant 0 : index
    %122 = vector.load %arg6[%c0_52, %c4_53, %c0_54, %c0_55] : memref<1x8x16x128xf32, #tpu.memory_space<vmem>>, vector<1x1x16x128xf32>
    %123 = vector.shape_cast %122 : vector<1x1x16x128xf32> to vector<16x128xf32>
    %124 = vector.shape_cast %121 : vector<16x128xf32> to vector<1x1x16x128xf32>
    tpu.vector_store %arg6[%c0_52, %c4_53, %c0_54, %c0_55], %124 {strides = array<i32>} : memref<1x8x16x128xf32, #tpu.memory_space<vmem>>, vector<1x1x16x128xf32>,
    %c5_56 = arith.constant 5 : index
    %125 = memref.load %arg4[%c5_56] : memref<8xf32, #tpu.memory_space<smem>>
    %c10 = arith.constant 10 : index
    %126 = memref.load %arg3[%c10] : memref<16xf32, #tpu.memory_space<smem>>
    %127 = vector.broadcast %126 : f32 to vector<16x128xf32>
    %128 = arith.mulf %127, %34 : vector<16x128xf32>
    %129 = vector.broadcast %125 : f32 to vector<16x128xf32>
    %130 = arith.addf %129, %128 : vector<16x128xf32>
    %c11 = arith.constant 11 : index
    %131 = memref.load %arg3[%c11] : memref<16xf32, #tpu.memory_space<smem>>
    %132 = vector.broadcast %131 : f32 to vector<16x128xf32>
    %133 = arith.mulf %132, %59 : vector<16x128xf32>
    %134 = arith.addf %130, %133 : vector<16x128xf32>
    %c0_57 = arith.constant 0 : index
    %c5_58 = arith.constant 5 : index
    %c0_59 = arith.constant 0 : index
    %c0_60 = arith.constant 0 : index
    %135 = vector.load %arg6[%c0_57, %c5_58, %c0_59, %c0_60] : memref<1x8x16x128xf32, #tpu.memory_space<vmem>>, vector<1x1x16x128xf32>
    %136 = vector.shape_cast %135 : vector<1x1x16x128xf32> to vector<16x128xf32>
    %137 = vector.shape_cast %134 : vector<16x128xf32> to vector<1x1x16x128xf32>
    tpu.vector_store %arg6[%c0_57, %c5_58, %c0_59, %c0_60], %137 {strides = array<i32>} : memref<1x8x16x128xf32, #tpu.memory_space<vmem>>, vector<1x1x16x128xf32>,
    %c6_61 = arith.constant 6 : index
    %138 = memref.load %arg4[%c6_61] : memref<8xf32, #tpu.memory_space<smem>>
    %c12 = arith.constant 12 : index
    %139 = memref.load %arg3[%c12] : memref<16xf32, #tpu.memory_space<smem>>
    %140 = vector.broadcast %139 : f32 to vector<16x128xf32>
    %141 = arith.mulf %140, %34 : vector<16x128xf32>
    %142 = vector.broadcast %138 : f32 to vector<16x128xf32>
    %143 = arith.addf %142, %141 : vector<16x128xf32>
    %c13 = arith.constant 13 : index
    %144 = memref.load %arg3[%c13] : memref<16xf32, #tpu.memory_space<smem>>
    %145 = vector.broadcast %144 : f32 to vector<16x128xf32>
    %146 = arith.mulf %145, %59 : vector<16x128xf32>
    %147 = arith.addf %143, %146 : vector<16x128xf32>
    %c0_62 = arith.constant 0 : index
    %c6_63 = arith.constant 6 : index
    %c0_64 = arith.constant 0 : index
    %c0_65 = arith.constant 0 : index
    %148 = vector.load %arg6[%c0_62, %c6_63, %c0_64, %c0_65] : memref<1x8x16x128xf32, #tpu.memory_space<vmem>>, vector<1x1x16x128xf32>
    %149 = vector.shape_cast %148 : vector<1x1x16x128xf32> to vector<16x128xf32>
    %150 = vector.shape_cast %147 : vector<16x128xf32> to vector<1x1x16x128xf32>
    tpu.vector_store %arg6[%c0_62, %c6_63, %c0_64, %c0_65], %150 {strides = array<i32>} : memref<1x8x16x128xf32, #tpu.memory_space<vmem>>, vector<1x1x16x128xf32>,
    %c7_66 = arith.constant 7 : index
    %151 = memref.load %arg4[%c7_66] : memref<8xf32, #tpu.memory_space<smem>>
    %c14 = arith.constant 14 : index
    %152 = memref.load %arg3[%c14] : memref<16xf32, #tpu.memory_space<smem>>
    %153 = vector.broadcast %152 : f32 to vector<16x128xf32>
    %154 = arith.mulf %153, %34 : vector<16x128xf32>
    %155 = vector.broadcast %151 : f32 to vector<16x128xf32>
    %156 = arith.addf %155, %154 : vector<16x128xf32>
    %c15 = arith.constant 15 : index
    %157 = memref.load %arg3[%c15] : memref<16xf32, #tpu.memory_space<smem>>
    %158 = vector.broadcast %157 : f32 to vector<16x128xf32>
    %159 = arith.mulf %158, %59 : vector<16x128xf32>
    %160 = arith.addf %156, %159 : vector<16x128xf32>
    %c0_67 = arith.constant 0 : index
    %c7_68 = arith.constant 7 : index
    %c0_69 = arith.constant 0 : index
    %c0_70 = arith.constant 0 : index
    %161 = vector.load %arg6[%c0_67, %c7_68, %c0_69, %c0_70] : memref<1x8x16x128xf32, #tpu.memory_space<vmem>>, vector<1x1x16x128xf32>
    %162 = vector.shape_cast %161 : vector<1x1x16x128xf32> to vector<16x128xf32>
    %163 = vector.shape_cast %160 : vector<16x128xf32> to vector<1x1x16x128xf32>
    tpu.vector_store %arg6[%c0_67, %c7_68, %c0_69, %c0_70], %163 {strides = array<i32>} : memref<1x8x16x128xf32, #tpu.memory_space<vmem>>, vector<1x1x16x128xf32>,
    return
  }
  func.func @transform_0(%arg0: i32, %arg1: i32) -> i32 {
    %c0_i32 = arith.constant 0 : i32
    %c0_i32_0 = arith.constant 0 : i32
    return %c0_i32 : i32
  }
  func.func @transform_1(%arg0: i32, %arg1: i32) -> i32 {
    %c0_i32 = arith.constant 0 : i32
    %c0_i32_0 = arith.constant 0 : i32
    return %c0_i32 : i32
  }
  func.func @transform_2(%arg0: i32, %arg1: i32) -> i32 {
    %c0_i32 = arith.constant 0 : i32
    %c0_i32_0 = arith.constant 0 : i32
    return %c0_i32 : i32
  }
  func.func @transform_3(%arg0: i32, %arg1: i32) -> (i32, i32, i32, i32) {
    %c0_i32 = arith.constant 0 : i32
    %c0_i32_0 = arith.constant 0 : i32
    %c0_i32_1 = arith.constant 0 : i32
    return %arg0, %c0_i32, %arg1, %c0_i32_0 : i32, i32, i32, i32
  }
  func.func @transform_4(%arg0: i32, %arg1: i32) -> (i32, i32, i32, i32) {
    %c0_i32 = arith.constant 0 : i32
    %c0_i32_0 = arith.constant 0 : i32
    %c0_i32_1 = arith.constant 0 : i32
    return %arg0, %c0_i32, %arg1, %c0_i32_0 : i32, i32, i32, i32
  }
}

</mosaic_0001>

<llo_original>
// kernel: tpu_custom_call.1
$region0: #{tpu_custom_call.1}
  #allocation0 [shape = 'u32[]', space=smem, size = 0x4, offset = 0x4, fixed_abs, tag = 'smem constant byte address 0x4 - core index']
  #allocation1 [shape = 'u32[144,128]{1,0:T(1,128)}', space=vmem, size = 0x12000, scoped, tag = 'internal scratch']
  #allocation12 [shape = 's32[]', space=sflag, size = 0x4, offset = 0, fixed_abs, tag = 'sflag constant byte address 0x0 - dummy sync flag']
  #allocation14 [shape = 's32[]', space=sflag, size = 0x4, offset = 0, fixed_abs, tag = 'sflag constant byte address 0x0 - dummy sync flag']
  %s0 = inlined_call_operand.hbm [shape: f32[10], index: 0, kind: input, shape index: {}]
  %s1 = inlined_call_operand.vmem [shape: f32[16], index: 1, kind: input, shape index: {}]
  %s2 = inlined_call_operand.vmem [shape: f32[8], index: 2, kind: input, shape index: {}]
  %s3 = inlined_call_operand.hbm [shape: f32[1,5,32,128], index: 3, kind: input, shape index: {}]
  %s4 = inlined_call_operand.hbm [shape: f32[1,8,32,128], index: 4, kind: output, shape index: {}]
  %s5 = sld [smem:[#allocation0]]
  $region65: #{tpu_custom_call.1} parent=0
    _
  %s7 = ssub.s32 1, %s5
  %s8 = scalar_select 0, %s7, %s5
  $region1: #{tpu_custom_call.1} parent=0
    #allocation2 [shape = 'u8[512]{0}', space=smem, size = 0x200, scoped, tag = 'input window, operand 0, single buffered']
    #allocation3 [shape = 's32[2]{0}', space=sflag, size = 0x8, scoped, tag = 'scoped memory for tpu_custom_call.1']
    #allocation4 [shape = 's32[2]{0}', space=sflag, size = 0x8, scoped, tag = 'scoped memory for tpu_custom_call.1']
    #allocation5 [shape = 's32[2]{0}', space=sflag, size = 0x8, scoped, tag = 'scoped memory for tpu_custom_call.1']
    #allocation6 [shape = 's32[2]{0}', space=sflag, size = 0x8, scoped, tag = 'scoped memory for tpu_custom_call.1']
    #allocation7 [shape = 'u8[512]{0}', space=smem, size = 0x200, scoped, tag = 'input window, operand 1, single buffered']
    #allocation8 [shape = 'u8[512]{0}', space=smem, size = 0x200, scoped, tag = 'input window, operand 2, single buffered']
    #allocation9 [shape = 's32[1]{0}', space=sflag, size = 0x4, scoped, tag = 'scoped memory for tpu_custom_call.1']
    #allocation10 [shape = 'u8[81920]{0}', space=vmem, size = 0x14000, scoped, tag = 'input window, operand 3']
    #allocation11 [shape = 'u8[131072]{0}', space=vmem, size = 0x20000, scoped, tag = 'output window, operand 0']
    %9 = vsyncpa [#allocation5], 0
    %10 = vsyncpa [#allocation6], 0
    %11 = vsyncpa [#allocation9], 0
    %12 = vsyncpa [#allocation3], 0
    %s13 = scalar_lea.sflag [#allocation3], 1
    %14 = vsyncpa %s13, 0
    %15 = vsyncpa [#allocation4], 0
    %s16 = scalar_lea.sflag [#allocation4], 1
    %17 = vsyncpa %s16, 0
    loop: start=0, step=1, limit=4
    $region2: #{tpu_custom_call.1} parent=1 // loop_pre_header
      _
    $region3: #{tpu_custom_call.1} parent=1 // loop_header
      %s19 = sphi 0, %s23
      %p20 = scmp.ge.s32.totalorder %s19, 4
      %s26 = sphi 0, %s38
      %s27 = sphi 0, %s34
      %s28 = sphi 0, %s26
      %s29 = sphi 0, %s27
      %s30 = sphi 0, %s28
      %s31 = sphi 0, %s29
      %s39 = sphi 0, %s39
      %s41 = sphi 0, %s39
      %s42 = sphi 0, %s41
      %s56 = sphi 0, %s42
      %s60 = sphi 0, %s60
      %s62 = sphi 0, %s60
      %s63 = sphi 0, %s62
      %s77 = sphi 0, %s63
      %s81 = sphi 0, %s81
      %s83 = sphi 0, %s81
      %s84 = sphi 0, %s83
      %s98 = sphi 0, %s84
      %s106 = sphi 0, %s108
      %s109 = sphi 0, %s106
      %s110 = sphi 0, %s109
      %s126 = sphi 0, %s110
      %s134 = sphi 0, %s136
      %s137 = sphi 0, %s134
      %s138 = sphi 0, %s137
      %s154 = sphi 0, %s138
    $region4: #{tpu_custom_call.1} parent=1 // loop_header_branch
      %22 = sbr.rel (%p20) target = $region8
    $region5: #{tpu_custom_call.1} parent=1 // loop_body
      %s24 = ssub.s32 %s19, 1
      %s25 = ssub.s32 %s19, 2
      %s32 = sadd.s32 1, %s27
      %p33 = scmp.ge.s32.totalorder %s32, 2
      %s34 = scalar_select %p33, 0, %s32
      %s35 = sadd.s32 1, %s26
      %s36 = scalar_select %p33, %s35, %s26
      %p37 = scmp.ge.s32.totalorder %s36, 1
      %s38 = scalar_select %p37, 0, %s36
      %s40 = sadd.s32 %s39, 1
      %p43 = scmp.eq.s32.totalorder %s19, 1
      %p44 = scmp.ne.s32.totalorder %s39, %s41
      %p45 = scmp.eq.s32.totalorder %s19, 0
      %p46 = por %p44, %p45
      %p47 = scmp.ne.s32.totalorder %s39, %s41
      %p48 = scmp.eq.s32.totalorder %s24, 1
      %p49 = por %p47, %p48
      %p50 = scmp.ne.s32.totalorder %s41, %s42
      %p51 = scmp.eq.s32.totalorder %s24, 0
      %p52 = por %p50, %p51
      %p53 = scmp.ne.s32.totalorder %s41, %s42
      %p54 = scmp.eq.s32.totalorder %s25, 1
      %p55 = por %p53, %p54
      %p57 = scmp.ne.s32.totalorder %s42, %s56
      %p58 = scmp.eq.s32.totalorder %s25, 0
      %p59 = por %p57, %p58
      %s61 = sadd.s32 %s60, 1
      %p64 = scmp.eq.s32.totalorder %s19, 1
      %p65 = scmp.ne.s32.totalorder %s60, %s62
      %p66 = scmp.eq.s32.totalorder %s19, 0
      %p67 = por %p65, %p66
      %p68 = scmp.ne.s32.totalorder %s60, %s62
      %p69 = scmp.eq.s32.totalorder %s24, 1
      %p70 = por %p68, %p69
      %p71 = scmp.ne.s32.totalorder %s62, %s63
      %p72 = scmp.eq.s32.totalorder %s24, 0
      %p73 = por %p71, %p72
      %p74 = scmp.ne.s32.totalorder %s62, %s63
      %p75 = scmp.eq.s32.totalorder %s25, 1
      %p76 = por %p74, %p75
      %p78 = scmp.ne.s32.totalorder %s63, %s77
      %p79 = scmp.eq.s32.totalorder %s25, 0
      %p80 = por %p78, %p79
      %s82 = sadd.s32 %s81, 1
      %p85 = scmp.eq.s32.totalorder %s19, 1
      %p86 = scmp.ne.s32.totalorder %s81, %s83
      %p87 = scmp.eq.s32.totalorder %s19, 0
      %p88 = por %p86, %p87
      %p89 = scmp.ne.s32.totalorder %s81, %s83
      %p90 = scmp.eq.s32.totalorder %s24, 1
      %p91 = por %p89, %p90
      %p92 = scmp.ne.s32.totalorder %s83, %s84
      %p93 = scmp.eq.s32.totalorder %s24, 0
      %p94 = por %p92, %p93
      %p95 = scmp.ne.s32.totalorder %s83, %s84
      %p96 = scmp.eq.s32.totalorder %s25, 1
      %p97 = por %p95, %p96
      %p99 = scmp.ne.s32.totalorder %s84, %s98
      %p100 = scmp.eq.s32.totalorder %s25, 0
      %p101 = por %p99, %p100
      %s102 = ssub.s32 %s26, %s38
      %s103 = ssub.s32 %s27, %s34
      %s104 = sor.u32 %s102, %s103
      %p105 = scmp.eq.s32.totalorder %s104, 0
      %s107 = sadd.s32 %s106, 1
      %s108 = scalar_select %p105, %s106, %s107
      %p111 = pneg %p105
      %p112 = scmp.eq.s32.totalorder %s19, 1
      %p113 = por %p111, %p112
      %p114 = scmp.ne.s32.totalorder %s106, %s109
      %p115 = scmp.eq.s32.totalorder %s19, 0
      %p116 = por %p114, %p115
      %p117 = scmp.ne.s32.totalorder %s106, %s109
      %p118 = scmp.eq.s32.totalorder %s24, 1
      %p119 = por %p117, %p118
      %p120 = scmp.ne.s32.totalorder %s109, %s110
      %p121 = scmp.eq.s32.totalorder %s24, 0
      %p122 = por %p120, %p121
      %p123 = scmp.ne.s32.totalorder %s109, %s110
      %p124 = scmp.eq.s32.totalorder %s25, 1
      %p125 = por %p123, %p124
      %p127 = scmp.ne.s32.totalorder %s110, %s126
      %p128 = scmp.eq.s32.totalorder %s25, 0
      %p129 = por %p127, %p128
      %s130 = ssub.s32 %s26, %s38
      %s131 = ssub.s32 %s27, %s34
      %s132 = sor.u32 %s130, %s131
      %p133 = scmp.eq.s32.totalorder %s132, 0
      %s135 = sadd.s32 %s134, 1
      %s136 = scalar_select %p133, %s134, %s135
      %p139 = pneg %p133
      %p140 = scmp.eq.s32.totalorder %s19, 1
      %p141 = por %p139, %p140
      %p142 = scmp.ne.s32.totalorder %s134, %s137
      %p143 = scmp.eq.s32.totalorder %s19, 0
      %p144 = por %p142, %p143
      %p145 = scmp.ne.s32.totalorder %s134, %s137
      %p146 = scmp.eq.s32.totalorder %s24, 1
      %p147 = por %p145, %p146
      %p148 = scmp.ne.s32.totalorder %s137, %s138
      %p149 = scmp.eq.s32.totalorder %s24, 0
      %p150 = por %p148, %p149
      %p151 = scmp.ne.s32.totalorder %s137, %s138
      %p152 = scmp.eq.s32.totalorder %s25, 1
      %p153 = por %p151, %p152
      %p155 = scmp.ne.s32.totalorder %s138, %s154
      %p156 = scmp.eq.s32.totalorder %s25, 0
      %p157 = por %p155, %p156
      %p158 = scmp.le.s32.totalorder 1, %s19
      %p159 = scmp.lt.s32.totalorder %s19, 3
      %p160 = pnand %p158, %p159
      %p161 = pneg %p160
      // Predicated region
      $region9: #{tpu_custom_call.1} parent=5 // pred_check
        _
      $region10: #{tpu_custom_call.1} parent=5 // pred_check_branch
        %163 = sbr.rel (%p160) target = $region12
      $region11: #{tpu_custom_call.1} parent=5 // pred_region
        %s164 = ssub.s32 %s19, 1
        // Predicated region
        $region13: #{tpu_custom_call.1} parent=11 // pred_check
          %p165 = pneg %p52
        $region14: #{tpu_custom_call.1} parent=11 // pred_check_branch
          %167 = sbr.rel (%p165) target = $region16
        $region15: #{tpu_custom_call.1} parent=11 // pred_region
          %s169 = ssub.s32 16, 16
          %170 = vsyncadd [#allocation5], %s169
          %173 = dma.hbm_to_smem %s0, 16, [#allocation2], [#allocation5]
        $region16: #{tpu_custom_call.1} parent=11 // pred_fallthru
          _
        // Predicated region
        $region17: #{tpu_custom_call.1} parent=11 // pred_check
          %p174 = pneg %p73
        $region18: #{tpu_custom_call.1} parent=11 // pred_check_branch
          %176 = sbr.rel (%p174) target = $region20
        $region19: #{tpu_custom_call.1} parent=11 // pred_region
          %s178 = ssub.s32 16, 16
          %179 = vsyncadd [#allocation6], %s178
          %s181 = sshll.u32 %s1, 4
          %s182 = int_to_ptr.vmem [resolvable:$true] %s181
          %184 = dma.vmem_to_smem %s182, 16, [#allocation7], [#allocation6]
        $region20: #{tpu_custom_call.1} parent=11 // pred_fallthru
          _
        // Predicated region
        $region21: #{tpu_custom_call.1} parent=11 // pred_check
          %p185 = pneg %p94
        $region22: #{tpu_custom_call.1} parent=11 // pred_check_branch
          %187 = sbr.rel (%p185) target = $region24
        $region23: #{tpu_custom_call.1} parent=11 // pred_region
          %s189 = ssub.s32 16, 16
          %190 = vsyncadd [#allocation9], %s189
          %s192 = sshll.u32 %s2, 4
          %s193 = int_to_ptr.vmem [resolvable:$true] %s192
          %195 = dma.vmem_to_smem %s193, 16, [#allocation8], [#allocation9]
        $region24: #{tpu_custom_call.1} parent=11 // pred_fallthru
          _
      $region12: #{tpu_custom_call.1} parent=5 // pred_fallthru
        _
      %p196 = scmp.lt.s32.totalorder %s19, 2
      // Predicated region
      $region25: #{tpu_custom_call.1} parent=5 // pred_check
        %p197 = pneg %p196
      $region26: #{tpu_custom_call.1} parent=5 // pred_check_branch
        %199 = sbr.rel (%p197) target = $region28
      $region27: #{tpu_custom_call.1} parent=5 // pred_region
        // Predicated region
        $region29: #{tpu_custom_call.1} parent=27 // pred_check
          %p200 = pneg %p116
        $region30: #{tpu_custom_call.1} parent=27 // pred_check_branch
          %202 = sbr.rel (%p200) target = $region32
        $region31: #{tpu_custom_call.1} parent=27 // pred_region
          #allocation13 [shape = 'u32[6]{0}', space=smem, size = 0x18, scoped, tag = 'DMA stride descriptor']
          %s203 = sand.u32 %s106, 1
          %s204 = scalar_lea.sflag [#allocation3], %s203
          %s205 = sand.u32 %s106, 1
          %s206 = smul.addr %s205, 80
          %s207 = scalar_lea.vmem [#allocation10], %s206
          %s208 = smul.u32 2, %s27
          %s210 = ssub.s32 1280, 1280
          %211 = vsyncadd %s204, %s210
          %s212 = smul.addr %s26, 20
          %s213 = sadd.s32 %s208, %s212
          %s214 = smul.addr %s213, 128
          %s215 = scalar_lea.hbm %s3, %s214
          %s217 = sshll.u32 1, 14
          %s218 = sxor.u32 4294967295, %s217
          %s220 = sld [smem:[#allocation0]]
          %s221 = sadd.s32 2, %s220
          %s223 = sshll.u32 7, 26
          %s224 = sxor.u32 4294967295, %s223
          %s225 = sand.u32 0, %s224
          %s226 = sshll.u32 %s221, 26
          %s227 = sor.u32 %s225, %s226
          %s228 = sshll.u32 %s207, 4
          %s229 = int_to_ptr.vmem [resolvable:$true] %s228
          %235 = sst [smem:[#allocation13]] 512
          %s236 = scalar_lea.smem [#allocation13], 1
          %237 = sst [smem:[%s236]] 256
          %s238 = scalar_lea.smem [#allocation13], 2
          %239 = sst [smem:[%s238]] 2
          %s240 = scalar_lea.smem [#allocation13], 3
          %241 = sst [smem:[%s240]] 128
          %s242 = scalar_lea.smem [#allocation13], 4
          %243 = sst [smem:[%s242]] 128
          %s244 = scalar_lea.smem [#allocation13], 5
          %245 = sst [smem:[%s244]] 8
          %247 = dma.general %s215, 1280, %s229, %s204, 131072, [#allocation13], %s227, 0
        $region32: #{tpu_custom_call.1} parent=27 // pred_fallthru
          _
      $region28: #{tpu_custom_call.1} parent=5 // pred_fallthru
        _
      %p248 = scmp.le.s32.totalorder 1, %s19
      %p249 = scmp.lt.s32.totalorder %s19, 3
      %p250 = pnand %p248, %p249
      %p251 = pneg %p250
      // Predicated region
      $region33: #{tpu_custom_call.1} parent=5 // pred_check
        _
      $region34: #{tpu_custom_call.1} parent=5 // pred_check_branch
        %253 = sbr.rel (%p250) target = $region36
      $region35: #{tpu_custom_call.1} parent=5 // pred_region
        %s254 = ssub.s32 %s19, 1
        // Predicated region
        $region37: #{tpu_custom_call.1} parent=35 // pred_check
          %p255 = pneg %p52
        $region38: #{tpu_custom_call.1} parent=35 // pred_check_branch
          %257 = sbr.rel (%p255) target = $region40
        $region39: #{tpu_custom_call.1} parent=35 // pred_region
          %258 = dma.done [#allocation5], 16
        $region40: #{tpu_custom_call.1} parent=35 // pred_fallthru
          _
        // Predicated region
        $region41: #{tpu_custom_call.1} parent=35 // pred_check
          %p259 = pneg %p73
        $region42: #{tpu_custom_call.1} parent=35 // pred_check_branch
          %261 = sbr.rel (%p259) target = $region44
        $region43: #{tpu_custom_call.1} parent=35 // pred_region
          %262 = dma.done [#allocation6], 16
        $region44: #{tpu_custom_call.1} parent=35 // pred_fallthru
          _
        // Predicated region
        $region45: #{tpu_custom_call.1} parent=35 // pred_check
          %p263 = pneg %p94
        $region46: #{tpu_custom_call.1} parent=35 // pred_check_branch
          %265 = sbr.rel (%p263) target = $region48
        $region47: #{tpu_custom_call.1} parent=35 // pred_region
          %266 = dma.done [#allocation9], 16
        $region48: #{tpu_custom_call.1} parent=35 // pred_fallthru
          _
        %s267 = sand.u32 %s109, 1
        %s268 = scalar_lea.sflag [#allocation3], %s267
        %s269 = sand.u32 %s109, 1
        %s270 = smul.addr %s269, 80
        %s271 = scalar_lea.vmem [#allocation10], %s270
        // Predicated region
        $region49: #{tpu_custom_call.1} parent=35 // pred_check
          %p272 = pneg %p122
        $region50: #{tpu_custom_call.1} parent=35 // pred_check_branch
          %274 = sbr.rel (%p272) target = $region52
        $region51: #{tpu_custom_call.1} parent=35 // pred_region
          %275 = dma.done %s268, 1280
        $region52: #{tpu_custom_call.1} parent=35 // pred_fallthru
          _
        %276 = sfence
        %p277 = pneg %p52
        %p278 = pneg %p49
        %p279 = pneg %p73
        %p280 = pneg %p70
        %p281 = pneg %p94
        %p282 = pneg %p91
        %s283 = sand.u32 %s109, 1
        %s284 = scalar_lea.sflag [#allocation3], %s283
        %s285 = sand.u32 %s109, 1
        %s286 = smul.addr %s285, 80
        %s287 = scalar_lea.vmem [#allocation10], %s286
        %p288 = pneg %p122
        %p289 = pneg %p119
        %p290 = pneg %p150
        %p291 = pneg %p147
        %s292 = sand.u32 %s137, 1
        %s293 = scalar_lea.sflag [#allocation4], %s292
        %s294 = sand.u32 %s137, 1
        %s295 = smul.addr %s294, 128
        %s296 = scalar_lea.vmem [#allocation11], %s295
        %s297 = smul.u32 2, %s29
        %s298 = smul.u32 2, %s29
        %v299 = vld [vmem:[%s271] sm:$0xff]
        %v300 = vld [vmem:[%s271 + $0x8] sm:$0xff]
        %s301 = scalar_lea.vmem %s271, 16 [#allocation10]
        %v302 = vld [vmem:[%s301] sm:$0xff]
        %v303 = vld [vmem:[%s301 + $0x8] sm:$0xff]
        %s304 = scalar_lea.vmem %s271, 32 [#allocation10]
        %v305 = vld [vmem:[%s304] sm:$0xff]
        %v306 = vld [vmem:[%s304 + $0x8] sm:$0xff]
        %s307 = scalar_lea.vmem %s271, 48 [#allocation10]
        %v308 = vld [vmem:[%s307] sm:$0xff]
        %v309 = vld [vmem:[%s307 + $0x8] sm:$0xff]
        %s310 = scalar_lea.vmem %s271, 64 [#allocation10]
        %v311 = vld [vmem:[%s310] sm:$0xff]
        %v312 = vld [vmem:[%s310 + $0x8] sm:$0xff]
        %s313 = sld [smem:[#allocation2]]
        %v314 = vstv %s313
        %v315 = vmul.f32 %v314, %v299
        %v316 = vmul.f32 %v314, %v300
        %s317 = sld [smem:[#allocation2 + $0x1]]
        %v318 = vstv %s317
        %v319 = vmul.f32 %v318, %v302
        %v320 = vmul.f32 %v318, %v303
        %v321 = vadd.f32 %v315, %v319
        %v322 = vadd.f32 %v316, %v320
        %s323 = sld [smem:[#allocation2 + $0x2]]
        %v324 = vstv %s323
        %v325 = vmul.f32 %v324, %v305
        %v326 = vmul.f32 %v324, %v306
        %v327 = vadd.f32 %v321, %v325
        %v328 = vadd.f32 %v322, %v326
        %s329 = sld [smem:[#allocation2 + $0x3]]
        %v330 = vstv %s329
        %v331 = vmul.f32 %v330, %v308
        %v332 = vmul.f32 %v330, %v309
        %v333 = vadd.f32 %v327, %v331
        %v334 = vadd.f32 %v328, %v332
        %s335 = sld [smem:[#allocation2 + $0x4]]
        %v336 = vstv %s335
        %v337 = vmul.f32 %v336, %v311
        %v338 = vmul.f32 %v336, %v312
        %v339 = vadd.f32 %v333, %v337
        %v340 = vadd.f32 %v334, %v338
        %v341 = vxor.u32 %v339, 2147483648
        %v342 = vxor.u32 %v340, 2147483648
        %v343 = vmul.f32 %v341, 1.442695
        %v344 = vpow.pop %v343
        %v345 = vmul.f32 %v342, 1.442695
        %v346 = vpow.pop %v345
        %v347 = vadd.f32 %v344, 1.0
        %v348 = vadd.f32 %v346, 1.0
        %v349 = vrcp.pop %v347
        %v350 = vmul.f32 1.0, %v349
        %v351 = vrcp.pop %v348
        %v352 = vmul.f32 1.0, %v351
        %v353 = vmul.f32 %v339, %v350
        %v354 = vmul.f32 %v340, %v352
        %s355 = sld [smem:[#allocation2 + $0x5]]
        %v356 = vstv %s355
        %v357 = vmul.f32 %v356, %v299
        %v358 = vmul.f32 %v356, %v300
        %s359 = sld [smem:[#allocation2 + $0x6]]
        %v360 = vstv %s359
        %v361 = vmul.f32 %v360, %v302
        %v362 = vmul.f32 %v360, %v303
        %v363 = vadd.f32 %v357, %v361
        %v364 = vadd.f32 %v358, %v362
        %s365 = sld [smem:[#allocation2 + $0x7]]
        %v366 = vstv %s365
        %v367 = vmul.f32 %v366, %v305
        %v368 = vmul.f32 %v366, %v306
        %v369 = vadd.f32 %v363, %v367
        %v370 = vadd.f32 %v364, %v368
        %s371 = sld [smem:[#allocation2 + $0x8]]
        %v372 = vstv %s371
        %v373 = vmul.f32 %v372, %v308
        %v374 = vmul.f32 %v372, %v309
        %v375 = vadd.f32 %v369, %v373
        %v376 = vadd.f32 %v370, %v374
        %s377 = sld [smem:[#allocation2 + $0x9]]
        %v378 = vstv %s377
        %v379 = vmul.f32 %v378, %v311
        %v380 = vmul.f32 %v378, %v312
        %v381 = vadd.f32 %v375, %v379
        %v382 = vadd.f32 %v376, %v380
        %v383 = vxor.u32 %v381, 2147483648
        %v384 = vxor.u32 %v382, 2147483648
        %v385 = vmul.f32 %v383, 1.442695
        %v386 = vpow.pop %v385
        %v387 = vmul.f32 %v384, 1.442695
        %v388 = vpow.pop %v387
        %v389 = vadd.f32 %v386, 1.0
        %v390 = vadd.f32 %v388, 1.0
        %v391 = vrcp.pop %v389
        %v392 = vmul.f32 1.0, %v391
        %v393 = vrcp.pop %v390
        %v394 = vmul.f32 1.0, %v393
        %v395 = vmul.f32 %v381, %v392
        %v396 = vmul.f32 %v382, %v394
        %s397 = sld [smem:[#allocation8]]
        %s398 = sld [smem:[#allocation7]]
        %v399 = vstv %s398
        %v400 = vmul.f32 %v399, %v353
        %v401 = vmul.f32 %v399, %v354
        %v402 = vstv %s397
        %v403 = vadd.f32 %v402, %v400
        %v404 = vadd.f32 %v402, %v401
        %s405 = sld [smem:[#allocation7 + $0x1]]
        %v406 = vstv %s405
        %v407 = vmul.f32 %v406, %v395
        %v408 = vmul.f32 %v406, %v396
        %v409 = vadd.f32 %v403, %v407
        %v410 = vadd.f32 %v404, %v408
        %411 = vst [vmem:[%s296] sm:$0xff] %v409
        %412 = vst [vmem:[%s296 + $0x8] sm:$0xff] %v410
        %s413 = sld [smem:[#allocation8 + $0x1]]
        %s414 = sld [smem:[#allocation7 + $0x2]]
        %v415 = vstv %s414
        %v416 = vmul.f32 %v415, %v353
        %v417 = vmul.f32 %v415, %v354
        %v418 = vstv %s413
        %v419 = vadd.f32 %v418, %v416
        %v420 = vadd.f32 %v418, %v417
        %s421 = sld [smem:[#allocation7 + $0x3]]
        %v422 = vstv %s421
        %v423 = vmul.f32 %v422, %v395
        %v424 = vmul.f32 %v422, %v396
        %v425 = vadd.f32 %v419, %v423
        %v426 = vadd.f32 %v420, %v424
        %s427 = scalar_lea.vmem %s296, 16 [#allocation11]
        %428 = vst [vmem:[%s427] sm:$0xff] %v425
        %429 = vst [vmem:[%s427 + $0x8] sm:$0xff] %v426
        %s430 = sld [smem:[#allocation8 + $0x2]]
        %s431 = sld [smem:[#allocation7 + $0x4]]
        %v432 = vstv %s431
        %v433 = vmul.f32 %v432, %v353
        %v434 = vmul.f32 %v432, %v354
        %v435 = vstv %s430
        %v436 = vadd.f32 %v435, %v433
        %v437 = vadd.f32 %v435, %v434
        %s438 = sld [smem:[#allocation7 + $0x5]]
        %v439 = vstv %s438
        %v440 = vmul.f32 %v439, %v395
        %v441 = vmul.f32 %v439, %v396
        %v442 = vadd.f32 %v436, %v440
        %v443 = vadd.f32 %v437, %v441
        %s444 = scalar_lea.vmem %s296, 32 [#allocation11]
        %445 = vst [vmem:[%s444] sm:$0xff] %v442
        %446 = vst [vmem:[%s444 + $0x8] sm:$0xff] %v443
        %s447 = sld [smem:[#allocation8 + $0x3]]
        %s448 = sld [smem:[#allocation7 + $0x6]]
        %v449 = vstv %s448
        %v450 = vmul.f32 %v449, %v353
        %v451 = vmul.f32 %v449, %v354
        %v452 = vstv %s447
        %v453 = vadd.f32 %v452, %v450
        %v454 = vadd.f32 %v452, %v451
        %s455 = sld [smem:[#allocation7 + $0x7]]
        %v456 = vstv %s455
        %v457 = vmul.f32 %v456, %v395
        %v458 = vmul.f32 %v456, %v396
        %v459 = vadd.f32 %v453, %v457
        %v460 = vadd.f32 %v454, %v458
        %s461 = scalar_lea.vmem %s296, 48 [#allocation11]
        %462 = vst [vmem:[%s461] sm:$0xff] %v459
        %463 = vst [vmem:[%s461 + $0x8] sm:$0xff] %v460
        %s464 = sld [smem:[#allocation8 + $0x4]]
        %s465 = sld [smem:[#allocation7 + $0x8]]
        %v466 = vstv %s465
        %v467 = vmul.f32 %v466, %v353
        %v468 = vmul.f32 %v466, %v354
        %v469 = vstv %s464
        %v470 = vadd.f32 %v469, %v467
        %v471 = vadd.f32 %v469, %v468
        %s472 = sld [smem:[#allocation7 + $0x9]]
        %v473 = vstv %s472
        %v474 = vmul.f32 %v473, %v395
        %v475 = vmul.f32 %v473, %v396
        %v476 = vadd.f32 %v470, %v474
        %v477 = vadd.f32 %v471, %v475
        %s478 = scalar_lea.vmem %s296, 64 [#allocation11]
        %479 = vst [vmem:[%s478] sm:$0xff] %v476
        %480 = vst [vmem:[%s478 + $0x8] sm:$0xff] %v477
        %s481 = sld [smem:[#allocation8 + $0x5]]
        %s482 = sld [smem:[#allocation7 + $0xa]]
        %v483 = vstv %s482
        %v484 = vmul.f32 %v483, %v353
        %v485 = vmul.f32 %v483, %v354
        %v486 = vstv %s481
        %v487 = vadd.f32 %v486, %v484
        %v488 = vadd.f32 %v486, %v485
        %s489 = sld [smem:[#allocation7 + $0xb]]
        %v490 = vstv %s489
        %v491 = vmul.f32 %v490, %v395
        %v492 = vmul.f32 %v490, %v396
        %v493 = vadd.f32 %v487, %v491
        %v494 = vadd.f32 %v488, %v492
        %s495 = scalar_lea.vmem %s296, 80 [#allocation11]
        %496 = vst [vmem:[%s495] sm:$0xff] %v493
        %497 = vst [vmem:[%s495 + $0x8] sm:$0xff] %v494
        %s498 = sld [smem:[#allocation8 + $0x6]]
        %s499 = sld [smem:[#allocation7 + $0xc]]
        %v500 = vstv %s499
        %v501 = vmul.f32 %v500, %v353
        %v502 = vmul.f32 %v500, %v354
        %v503 = vstv %s498
        %v504 = vadd.f32 %v503, %v501
        %v505 = vadd.f32 %v503, %v502
        %s506 = sld [smem:[#allocation7 + $0xd]]
        %v507 = vstv %s506
        %v508 = vmul.f32 %v507, %v395
        %v509 = vmul.f32 %v507, %v396
        %v510 = vadd.f32 %v504, %v508
        %v511 = vadd.f32 %v505, %v509
        %s512 = scalar_lea.vmem %s296, 96 [#allocation11]
        %513 = vst [vmem:[%s512] sm:$0xff] %v510
        %514 = vst [vmem:[%s512 + $0x8] sm:$0xff] %v511
        %s515 = sld [smem:[#allocation8 + $0x7]]
        %s516 = sld [smem:[#allocation7 + $0xe]]
        %v517 = vstv %s516
        %v518 = vmul.f32 %v517, %v353
        %v519 = vmul.f32 %v517, %v354
        %v520 = vstv %s515
        %v521 = vadd.f32 %v520, %v518
        %v522 = vadd.f32 %v520, %v519
        %s523 = sld [smem:[#allocation7 + $0xf]]
        %v524 = vstv %s523
        %v525 = vmul.f32 %v524, %v395
        %v526 = vmul.f32 %v524, %v396
        %v527 = vadd.f32 %v521, %v525
        %v528 = vadd.f32 %v522, %v526
        %s529 = scalar_lea.vmem %s296, 112 [#allocation11]
        %530 = vst [vmem:[%s529] sm:$0xff] %v527
        %531 = vst [vmem:[%s529 + $0x8] sm:$0xff] %v528
        %s532 = sand.u32 %s137, 1
        %s533 = scalar_lea.sflag [#allocation4], %s532
        %s534 = sand.u32 %s137, 1
        %s535 = smul.addr %s534, 128
        %s536 = scalar_lea.vmem [#allocation11], %s535
        // Predicated region
        $region53: #{tpu_custom_call.1} parent=35 // pred_check
          %p537 = pneg %p147
        $region54: #{tpu_custom_call.1} parent=35 // pred_check_branch
          %539 = sbr.rel (%p537) target = $region56
        $region55: #{tpu_custom_call.1} parent=35 // pred_region
          #allocation15 [shape = 'u32[6]{0}', space=smem, size = 0x18, scoped, tag = 'DMA stride descriptor']
          %s540 = smul.u32 2, %s29
          %s542 = ssub.s32 2048, 2048
          %543 = vsyncadd %s533, %s542
          %s544 = smul.addr %s28, 32
          %s545 = sadd.s32 %s540, %s544
          %s546 = smul.addr %s545, 128
          %s547 = scalar_lea.hbm %s4, %s546
          %s549 = sshll.u32 1, 14
          %s550 = sxor.u32 4294967295, %s549
          %s553 = sshll.u32 7, 18
          %s554 = sxor.u32 4294967295, %s553
          %s555 = sand.u32 0, %s554
          %s557 = sor.u32 %s555, 0
          %s558 = sshll.u32 %s536, 4
          %s559 = int_to_ptr.vmem [resolvable:$true] %s558
          %565 = sst [smem:[#allocation15]] 256
          %s566 = scalar_lea.smem [#allocation15], 1
          %567 = sst [smem:[%s566]] 512
          %s568 = scalar_lea.smem [#allocation15], 2
          %569 = sst [smem:[%s568]] 2
          %s570 = scalar_lea.smem [#allocation15], 3
          %571 = sst [smem:[%s570]] 128
          %s572 = scalar_lea.smem [#allocation15], 4
          %573 = sst [smem:[%s572]] 128
          %s574 = scalar_lea.smem [#allocation15], 5
          %575 = sst [smem:[%s574]] 8
          %577 = dma.general %s559, 2048, %s547, %s533, 131072, [#allocation15], %s557, 0
        $region56: #{tpu_custom_call.1} parent=35 // pred_fallthru
          _
      $region36: #{tpu_custom_call.1} parent=5 // pred_fallthru
        _
      %p578 = scmp.le.s32.totalorder 2, %s19
      // Predicated region
      $region57: #{tpu_custom_call.1} parent=5 // pred_check
        %p579 = pneg %p578
      $region58: #{tpu_custom_call.1} parent=5 // pred_check_branch
        %581 = sbr.rel (%p579) target = $region60
      $region59: #{tpu_custom_call.1} parent=5 // pred_region
        %s582 = ssub.s32 %s19, 2
        // Predicated region
        $region61: #{tpu_custom_call.1} parent=59 // pred_check
          %p583 = pneg %p153
        $region62: #{tpu_custom_call.1} parent=59 // pred_check_branch
          %585 = sbr.rel (%p583) target = $region64
        $region63: #{tpu_custom_call.1} parent=59 // pred_region
          %s586 = sand.u32 %s138, 1
          %s587 = scalar_lea.sflag [#allocation4], %s586
          %s588 = sand.u32 %s138, 1
          %s589 = smul.addr %s588, 128
          %s590 = scalar_lea.vmem [#allocation11], %s589
          %591 = dma.done %s587, 2048
        $region64: #{tpu_custom_call.1} parent=59 // pred_fallthru
          _
      $region60: #{tpu_custom_call.1} parent=5 // pred_fallthru
        _
    $region6: #{tpu_custom_call.1} parent=1 // loop_footer
      %s23 = sadd.s32 1, %s19
    $region7: #{tpu_custom_call.1} parent=1 // loop_footer_branch
      %18 = sbr.rel target = $region3
    $region8: #{tpu_custom_call.1} parent=1 // loop_exit
      _
    %592 = vsyncpa [#allocation3], 1
    %s593 = scalar_lea.sflag [#allocation3], 1
    %594 = vsyncpa %s593, 1
    %595 = vsyncpa [#allocation4], 1
    %s596 = scalar_lea.sflag [#allocation4], 1
    %597 = vsyncpa %s596, 1
    %598 = vsyncpa [#allocation5], 1
    %s599 = scalar_lea.sflag [#allocation5], 1
    %600 = vsyncpa %s599, 1
    %601 = vsyncpa [#allocation6], 1
    %s602 = scalar_lea.sflag [#allocation6], 1
    %603 = vsyncpa %s602, 1
    %604 = vsyncpa [#allocation9], 1

</llo_original>
